<compile_context>
chip_gen: v7x
topology: tpu7x:2x2x1
jax: 0.10.0
libtpu: 0.0.40
codegen_flags: <defaults>
</compile_context>

<pallas_src>
import functools

import jax
import jax.numpy as jnp
from jax import lax
from jax.experimental import pallas as pl
from jax.experimental.pallas import tpu as pltpu

LANES = 128
CHUNK_ROWS = 512  # in-kernel strip-mining chunk: 512 x 128 f32 = 256 KiB working set


def _device_caps():
    """Returns (has_two_tensorcores, target HBM bytes per input tile per step)."""
    kind = ""
    try:
        kind = jax.devices()[0].device_kind.lower()
    except Exception:
        pass
    two_tc = ("v7" in kind) or ("v4" in kind) or ("v5p" in kind)
    if "v7" in kind:
        tile_bytes = 4 << 20      # 16 MiB double-buffered; 32 MiB scoped-VMEM default
    elif ("v6" in kind) or ("v5" in kind) or ("v4" in kind):
        tile_bytes = 2 << 20      # 8 MiB double-buffered; fits v5e's 16 MiB default
    else:
        tile_bytes = 1 << 20      # unknown/older chip: stay well under scoped-VMEM defaults
    return two_tc, tile_bytes


def _rmse_sse_kernel(yhat_ref, y_ref, out_ref, acc_ref, *,
                     tile_rows, tiles_per_split, total_tiles, rows_total,
                     need_mask):
    """Accumulates per-lane partial sums of squared differences.

    out_ref block: (1, 1, LANES) -- one slot per parallel split.
    acc_ref:       (1, LANES) f32 VMEM accumulator (persists across the
                   sequential row-tile axis, axis 1 of the grid).
    """
    j = pl.program_id(1)              # sequential row-tile index within this split
    last_tile = total_tiles - 1

    @pl.when(j == 0)
    def _():
        acc_ref[...] = jnp.zeros_like(acc_ref)

    def tile_partial(masked):
        # Statically unrolled strip-mining: the live compute working set stays
        # at ~CHUNK_ROWS x 128 even though the DMA tile is multi-MiB.
        base = last_tile * tile_rows          # static; only meaningful when masked
        partial = jnp.zeros((1, LANES), jnp.float32)
        r0 = 0
        while r0 < tile_rows:
            cr = min(CHUNK_ROWS, tile_rows - r0)
            if masked and base + r0 >= rows_total:
                break                          # chunk fully past the data: skip entirely
            yh = yhat_ref[r0:r0 + cr, :].astype(jnp.float32)
            yy = y_ref[r0:r0 + cr, :].astype(jnp.float32)
            d = yh - yy
            d2 = d * d
            if masked and base + r0 + cr > rows_total:
                # Ragged boundary chunk: true select (never a multiply) so that
                # NaN/Inf garbage in the unwritten part of a partial edge block
                # is discarded.
                row_ids = (base + r0) + lax.broadcasted_iota(
                    jnp.int32, (cr, LANES), 0)
                d2 = jnp.where(row_ids < rows_total, d2, 0.0)
            partial = partial + jnp.sum(d2, axis=0, keepdims=True)
            r0 += cr
        return partial

    if not need_mask:
        acc_ref[...] += tile_partial(False)
    elif total_tiles == 1:
        acc_ref[...] += tile_partial(True)
    else:
        # Only the globally-last tile can be ragged; interior tiles skip the
        # iota/compare/select work entirely.
        i = pl.program_id(0)
        t = i * tiles_per_split + j

        @pl.when(t != last_tile)
        def _():
            acc_ref[...] += tile_partial(False)

        @pl.when(t == last_tile)
        def _():
            acc_ref[...] += tile_partial(True)

    @pl.when(j == pl.num_programs(1) - 1)
    def _():
        out_ref[0] = acc_ref[...]


def rmse_loss(yhat, y, eps=1e-6):
    assert yhat.shape == y.shape, "yhat and y must have the same shape"
    n_elems = yhat.size
    assert n_elems > 0

    flat_yh = yhat.reshape(-1)
    flat_y = y.reshape(-1)

    # Lane-dense 2D slab; the reshape is copy-free when n_elems % 128 == 0.
    # TODO(synk): for n_elems % 128 != 0 this still materializes one padded
    # copy of each input; an in-kernel flat-element mask over unpadded 1-D
    # inputs would remove that extra HBM read+write.
    rem = n_elems % LANES
    if rem:
        flat_yh = jnp.pad(flat_yh, (0, LANES - rem))
        flat_y = jnp.pad(flat_y, (0, LANES - rem))
    rows = pl.cdiv(n_elems, LANES)
    yh2d = flat_yh.reshape(rows, LANES)
    y2d = flat_y.reshape(rows, LANES)

    # Sublane alignment: 8 rows (32-bit), 16 (16-bit), 32 (8-bit); driven by
    # the narrowest input dtype so one block shape satisfies both inputs.
    itemsize_min = min(jnp.dtype(yhat.dtype).itemsize, jnp.dtype(y.dtype).itemsize)
    itemsize_max = max(jnp.dtype(yhat.dtype).itemsize, jnp.dtype(y.dtype).itemsize)
    align = {4: 8, 2: 16, 1: 32}.get(itemsize_min, 8)

    two_tc, tile_bytes = _device_caps()

    # Multi-MiB tiles amortize the ~0.35 us fixed per-grid-step overhead; rows
    # scale inversely with itemsize so bytes per step stay constant for
    # bf16/int8 inputs.
    target_rows = max(align, (tile_bytes // (LANES * itemsize_max)) // align * align)
    rows_aligned = pl.cdiv(rows, align) * align
    tile_rows = min(target_rows, rows_aligned)

    total_tiles = pl.cdiv(rows, tile_rows)

    # 2-way split only where a second TensorCore exists AND the tile count
    # splits exactly -> no clamped duplicate-tile DMA, no extra masking.
    # TODO(synk): on v7x verify the "parallel" axis really shards across the
    # two TCs; if not, switch axis 0 to pltpu.CORE_PARALLEL / pl.core_map.
    if two_tc and total_tiles >= 2 and total_tiles % 2 == 0:
        num_splits = 2
    else:
        num_splits = 1
    tiles_per_split = total_tiles // num_splits

    need_mask = (rows % tile_rows) != 0

    def in_map(i, j):
        return (i * tiles_per_split + j, 0)

    kernel = functools.partial(
        _rmse_sse_kernel,
        tile_rows=tile_rows,
        tiles_per_split=tiles_per_split,
        total_tiles=total_tiles,
        rows_total=rows,
        need_mask=need_mask,
    )

    partials = pl.pallas_call(
        kernel,
        out_shape=jax.ShapeDtypeStruct((num_splits, 1, LANES), jnp.float32),
        grid_spec=pltpu.PrefetchScalarGridSpec(
            num_scalar_prefetch=0,
            grid=(num_splits, tiles_per_split),
            in_specs=[
                # Default 2-deep pipelining hides the DMA at these tile sizes;
                # bump to pipeline_mode=pl.Buffered(3) only if a trace shows
                # exposed DMA.
                pl.BlockSpec((tile_rows, LANES), in_map),
                pl.BlockSpec((tile_rows, LANES), in_map),
            ],
            out_specs=pl.BlockSpec((1, 1, LANES), lambda i, j: (i, 0, 0)),
            scratch_shapes=[pltpu.VMEM((1, LANES), jnp.float32)],
        ),
        compiler_params=pltpu.CompilerParams(
            dimension_semantics=("parallel", "arbitrary"),
        ),
    )(yh2d, y2d)

    # Tiny epilogue: one cross-lane/cross-split combine + sqrt(mean + eps).
    sse = jnp.sum(partials)
    return jnp.sqrt(sse / jnp.float32(n_elems) + jnp.float32(eps))


def _ref_loss(yhat, y, eps=1e-6):
    d = yhat.astype(jnp.float32) - y.astype(jnp.float32)
    return jnp.sqrt(jnp.mean(d * d) + jnp.float32(eps))


if __name__ == "__main__":
    keys = jax.random.split(jax.random.PRNGKey(0), 8)

    # Main example: NCHW [2, 4, 16, 16] (the loss is layout-agnostic).
    yhat = jax.random.normal(keys[0], (2, 4, 16, 16), dtype=jnp.float32)
    y = jax.random.normal(keys[1], (2, 4, 16, 16), dtype=jnp.float32)
    loss = jax.block_until_ready(rmse_loss(yhat, y, eps=1e-6))
    ref = _ref_loss(yhat, y)
    assert jnp.allclose(loss, ref, rtol=1e-4, atol=1e-6), (loss, ref)

    # bf16 path (native-dtype streaming, in-kernel upcast, 16-row alignment).
    yhat_bf = jax.random.normal(keys[2], (2, 4, 16, 16), dtype=jnp.bfloat16)
    y_bf = jax.random.normal(keys[3], (2, 4, 16, 16), dtype=jnp.bfloat16)
    loss_bf = jax.block_until_ready(rmse_loss(yhat_bf, y_bf, eps=1e-6))
    ref_bf = _ref_loss(yhat_bf, y_bf)
    assert jnp.allclose(loss_bf, ref_bf, rtol=1e-4, atol=1e-6), (loss_bf, ref_bf)

    # Mixed dtype (f32 yhat vs bf16 y): the shared block shape must satisfy
    # both inputs' sublane packing.
    loss_mix = jax.block_until_ready(rmse_loss(yhat, y_bf, eps=1e-6))
    ref_mix = _ref_loss(yhat, y_bf)
    assert jnp.allclose(loss_mix, ref_mix, rtol=1e-4, atol=1e-6), (loss_mix, ref_mix)

    # Ragged path: element count not a multiple of 128 (tail pad + row mask).
    yhat_r = jax.random.normal(keys[4], (2, 4, 15, 15), dtype=jnp.float32)
    y_r = jax.random.normal(keys[5], (2, 4, 15, 15), dtype=jnp.float32)
    loss_r = jax.block_until_ready(rmse_loss(yhat_r, y_r, eps=1e-6))
    ref_r = _ref_loss(yhat_r, y_r)
    assert jnp.allclose(loss_r, ref_r, rtol=1e-4, atol=1e-6), (loss_r, ref_r)

    # Multi-tile coverage: 8320 rows of 128 lanes -> several large tiles,
    # ragged last tile, and (on 2-TensorCore chips) the exact 2-way split.
    yhat_s = jax.random.normal(keys[6], (8, 16, 65, 128), dtype=jnp.float32)
    y_s = jax.random.normal(keys[7], (8, 16, 65, 128), dtype=jnp.float32)
    loss_s = jax.block_until_ready(rmse_loss(yhat_s, y_s, eps=1e-6))
    ref_s = _ref_loss(yhat_s, y_s)
    assert jnp.allclose(loss_s, ref_s, rtol=1e-4, atol=1e-6), (loss_s, ref_s)

    print("KERNEL_OK")
</pallas_src>

<mosaic_0001>
module attributes {stable_mosaic.version = 11 : i64} {
  func.func @_rmse_sse_kernel(%arg0: i32, %arg1: i32, %arg2: memref<16x128xf32, #tpu.memory_space<vmem>>, %arg3: memref<16x128xf32, #tpu.memory_space<vmem>>, %arg4: memref<1x1x128xf32, #tpu.memory_space<vmem>>, %arg5: memref<1x128xf32, #tpu.memory_space<vmem>>) attributes {dimension_semantics = [#tpu.dimension_semantics<parallel>, #tpu.dimension_semantics<arbitrary>], iteration_bounds = array<i64: 1, 1>, scalar_prefetch = 0 : i64, scratch_operands = 1 : i64, tpu.core_type = #tpu.core_type<tc>, window_params = [{transform_indices = @transform_0, window_bounds = array<i64: 16, 128>}, {transform_indices = @transform_1, window_bounds = array<i64: 16, 128>}, {transform_indices = @transform_2, window_bounds = array<i64: 1, 1, 128>}]} {
    %c0_i32 = arith.constant 0 : i32
    %0 = arith.cmpi eq, %arg1, %c0_i32 : i32
    %1 = arith.extui %0 : i1 to i32
    %c0_i32_0 = arith.constant 0 : i32
    %2 = arith.cmpi ne, %1, %c0_i32_0 : i32
    scf.if %2 {
      %cst_11 = arith.constant 0.000000e+00 : f32
      %17 = vector.broadcast %cst_11 : f32 to vector<1x128xf32>
      %c0_12 = arith.constant 0 : index
      %c0_13 = arith.constant 0 : index
      %18 = vector.load %arg5[%c0_12, %c0_13] : memref<1x128xf32, #tpu.memory_space<vmem>>, vector<1x128xf32>
      tpu.vector_store %arg5[%c0_12, %c0_13], %17 {strides = array<i32>} : memref<1x128xf32, #tpu.memory_space<vmem>>, vector<1x128xf32>,
    } else {
    }
    %c0 = arith.constant 0 : index
    %c0_1 = arith.constant 0 : index
    %3 = vector.load %arg5[%c0, %c0_1] : memref<1x128xf32, #tpu.memory_space<vmem>>, vector<1x128xf32>
    %cst = arith.constant 0.000000e+00 : f32
    %4 = vector.broadcast %cst : f32 to vector<1x128xf32>
    %c0_2 = arith.constant 0 : index
    %c0_3 = arith.constant 0 : index
    %5 = vector.load %arg2[%c0_2, %c0_3] : memref<16x128xf32, #tpu.memory_space<vmem>>, vector<16x128xf32>
    %c0_4 = arith.constant 0 : index
    %c0_5 = arith.constant 0 : index
    %6 = vector.load %arg3[%c0_4, %c0_5] : memref<16x128xf32, #tpu.memory_space<vmem>>, vector<16x128xf32>
    %7 = arith.subf %5, %6 : vector<16x128xf32>
    %8 = arith.mulf %7, %7 : vector<16x128xf32>
    %cst_6 = arith.constant dense<0.000000e+00> : vector<128xf32>
    %9 = vector.multi_reduction <add>, %8, %cst_6 [0] : vector<16x128xf32> to vector<128xf32>
    %10 = vector.shape_cast %9 : vector<128xf32> to vector<1x128xf32>
    %11 = arith.addf %4, %10 : vector<1x128xf32>
    %12 = arith.addf %3, %11 : vector<1x128xf32>
    %c0_7 = arith.constant 0 : index
    %c0_8 = arith.constant 0 : index
    %13 = vector.load %arg5[%c0_7, %c0_8] : memref<1x128xf32, #tpu.memory_space<vmem>>, vector<1x128xf32>
    tpu.vector_store %arg5[%c0_7, %c0_8], %12 {strides = array<i32>} : memref<1x128xf32, #tpu.memory_space<vmem>>, vector<1x128xf32>,
    %c0_i32_9 = arith.constant 0 : i32
    %14 = arith.cmpi eq, %arg1, %c0_i32_9 : i32
    %15 = arith.extui %14 : i1 to i32
    %c0_i32_10 = arith.constant 0 : i32
    %16 = arith.cmpi ne, %15, %c0_i32_10 : i32
    scf.if %16 {
      %c0_11 = arith.constant 0 : index
      %c0_12 = arith.constant 0 : index
      %17 = vector.load %arg5[%c0_11, %c0_12] : memref<1x128xf32, #tpu.memory_space<vmem>>, vector<1x128xf32>
      %c0_13 = arith.constant 0 : index
      %c0_14 = arith.constant 0 : index
      %c0_15 = arith.constant 0 : index
      %18 = vector.load %arg4[%c0_13, %c0_14, %c0_15] : memref<1x1x128xf32, #tpu.memory_space<vmem>>, vector<1x1x128xf32>
      %19 = vector.shape_cast %18 : vector<1x1x128xf32> to vector<1x128xf32>
      %20 = vector.shape_cast %17 : vector<1x128xf32> to vector<1x1x128xf32>
      tpu.vector_store %arg4[%c0_13, %c0_14, %c0_15], %20 {strides = array<i32>} : memref<1x1x128xf32, #tpu.memory_space<vmem>>, vector<1x1x128xf32>,
    } else {
    }
    return
  }
  func.func @transform_0(%arg0: i32, %arg1: i32) -> (i32, i32) {
    %c1_i32 = arith.constant 1 : i32
    %0 = arith.muli %arg0, %c1_i32 : i32
    %1 = arith.addi %0, %arg1 : i32
    %c0_i32 = arith.constant 0 : i32
    %c0_i32_0 = arith.constant 0 : i32
    return %1, %c0_i32 : i32, i32
  }
  func.func @transform_1(%arg0: i32, %arg1: i32) -> (i32, i32) {
    %c1_i32 = arith.constant 1 : i32
    %0 = arith.muli %arg0, %c1_i32 : i32
    %1 = arith.addi %0, %arg1 : i32
    %c0_i32 = arith.constant 0 : i32
    %c0_i32_0 = arith.constant 0 : i32
    return %1, %c0_i32 : i32, i32
  }
  func.func @transform_2(%arg0: i32, %arg1: i32) -> (i32, i32, i32) {
    %c0_i32 = arith.constant 0 : i32
    %c0_i32_0 = arith.constant 0 : i32
    %c0_i32_1 = arith.constant 0 : i32
    return %arg0, %c0_i32, %c0_i32_0 : i32, i32, i32
  }
}

</mosaic_0001>

<llo_original>
// kernel: tpu_custom_call.1
$region0: #{tpu_custom_call.1}
  #allocation0 [shape = 'u32[]', space=smem, size = 0x4, offset = 0x4, fixed_abs, tag = 'smem constant byte address 0x4 - core index']
  #allocation1 [shape = 'u32[144,128]{1,0:T(1,128)}', space=vmem, size = 0x12000, scoped, tag = 'internal scratch']
  #allocation2 [shape = 'f32[1,128]{1,0:T(1,128)}', space=vmem, size = 0x200, scoped, tag = 'scratch operand']
  %s0 = inlined_call_operand.hbm [shape: f32[16,128], index: 0, kind: input, shape index: {}]
  %s1 = inlined_call_operand.hbm [shape: f32[16,128], index: 1, kind: input, shape index: {}]
  %s2 = inlined_call_operand.hbm [shape: f32[1,1,128], index: 2, kind: output, shape index: {}]
  %s3 = sld [smem:[#allocation0]]
  $region34: #{tpu_custom_call.1} parent=0
    _
  %s5 = ssub.s32 1, %s3
  %s6 = scalar_select 0, %s5, %s3
  $region1: #{tpu_custom_call.1} parent=0
    #allocation3 [shape = 'u8[8192]{0}', space=vmem, size = 0x2000, scoped, tag = 'input window, operand 0, single buffered']
    #allocation4 [shape = 's32[1]{0}', space=sflag, size = 0x4, scoped, tag = 'scoped memory for tpu_custom_call.1']
    #allocation5 [shape = 's32[1]{0}', space=sflag, size = 0x4, scoped, tag = 'scoped memory for tpu_custom_call.1']
    #allocation6 [shape = 'u8[8192]{0}', space=vmem, size = 0x2000, scoped, tag = 'input window, operand 1, single buffered']
    #allocation7 [shape = 's32[1]{0}', space=sflag, size = 0x4, scoped, tag = 'scoped memory for tpu_custom_call.1']
    #allocation8 [shape = 'u8[512]{0}', space=vmem, size = 0x400, scoped, tag = 'output window, operand 0, single buffered']
    %7 = vsyncpa [#allocation4], 0
    %8 = vsyncpa [#allocation7], 0
    %9 = vsyncpa [#allocation5], 0
    // Predicated region
    $region2: #{tpu_custom_call.1} parent=1 // pred_check
      _
    $region3: #{tpu_custom_call.1} parent=1 // pred_check_branch
      %11 = sbr.rel (0) target = $region5
    $region4: #{tpu_custom_call.1} parent=1 // pred_region
      %s12 = sadd.s32 0, 0
      %s13 = smul.u32 2, %s12
      %s15 = ssub.s32 256, 256
      %16 = vsyncadd [#allocation4], %s15
      %s17 = smul.addr %s13, 128
      %s18 = scalar_lea.hbm %s0, %s17
      %s19 = sshll.u32 [#allocation3], 4
      %s20 = int_to_ptr.vmem [resolvable:$true] %s19
      %25 = dma.hbm_to_vmem [thread:$0]  %s18, 256, %s20, [#allocation4], 128, 128, 8
    $region5: #{tpu_custom_call.1} parent=1 // pred_fallthru
      _
    // Predicated region
    $region6: #{tpu_custom_call.1} parent=1 // pred_check
      _
    $region7: #{tpu_custom_call.1} parent=1 // pred_check_branch
      %27 = sbr.rel (0) target = $region9
    $region8: #{tpu_custom_call.1} parent=1 // pred_region
      %s28 = sadd.s32 0, 0
      %s29 = smul.u32 2, %s28
      %s31 = ssub.s32 256, 256
      %32 = vsyncadd [#allocation7], %s31
      %s33 = smul.addr %s29, 128
      %s34 = scalar_lea.hbm %s1, %s33
      %s35 = sshll.u32 [#allocation6], 4
      %s36 = int_to_ptr.vmem [resolvable:$true] %s35
      %41 = dma.hbm_to_vmem [thread:$0]  %s34, 256, %s36, [#allocation7], 128, 128, 8
    $region9: #{tpu_custom_call.1} parent=1 // pred_fallthru
      _
    // Predicated region
    $region10: #{tpu_custom_call.1} parent=1 // pred_check
      _
    $region11: #{tpu_custom_call.1} parent=1 // pred_check_branch
      %43 = sbr.rel (0) target = $region13
    $region12: #{tpu_custom_call.1} parent=1 // pred_region
      %44 = dma.done [#allocation4], 256
    $region13: #{tpu_custom_call.1} parent=1 // pred_fallthru
      _
    // Predicated region
    $region14: #{tpu_custom_call.1} parent=1 // pred_check
      _
    $region15: #{tpu_custom_call.1} parent=1 // pred_check_branch
      %46 = sbr.rel (0) target = $region17
    $region16: #{tpu_custom_call.1} parent=1 // pred_region
      %47 = dma.done [#allocation7], 256
    $region17: #{tpu_custom_call.1} parent=1 // pred_fallthru
      _
    %s48 = sadd.s32 0, 0
    %s49 = smul.u32 2, %s48
    %s50 = sadd.s32 0, 0
    %s51 = smul.u32 2, %s50
    %p52 = scmp.eq.s32.totalorder 0, 0
    // Predicated region
    $region18: #{tpu_custom_call.1} parent=1 // pred_check
      %p53 = pneg %p52
    $region19: #{tpu_custom_call.1} parent=1 // pred_check_branch
      %55 = sbr.rel (%p53) target = $region21
    $region20: #{tpu_custom_call.1} parent=1 // pred_region
      %56 = vst [vmem:[#allocation2] sm:$0x1] 0.0
    $region21: #{tpu_custom_call.1} parent=1 // pred_fallthru
      _
    %v57 = vld [vmem:[#allocation2] sm:$0x1]
    %v58 = vld [vmem:[#allocation3] sm:$0xff]
    %v59 = vld [vmem:[#allocation3 + $0x8] sm:$0xff]
    %v60 = vld [vmem:[#allocation6] sm:$0xff]
    %v61 = vld [vmem:[#allocation6 + $0x8] sm:$0xff]
    %v62 = vsub.f32 %v58, %v60
    %v63 = vsub.f32 %v59, %v61
    %v64 = vmul.f32 %v62, %v62
    %v65 = vmul.f32 %v63, %v63
    %v66 = vadd.f32 %v64, %v65
    %v67 = vrot.slane %v66, 4
    %v68 = vadd.f32 %v66, %v67
    %v69 = vrot.slane %v68, 2
    %v70 = vadd.f32 %v68, %v69
    %v71 = vrot.slane %v70, 1
    %v72 = vadd.f32 %v70, %v71
    %v73 = vadd.f32 %v72, 0.0
    %v74 = vadd.f32 %v57, %v73
    %75 = vst [vmem:[#allocation2] sm:$0x1] %v74
    // Predicated region
    $region22: #{tpu_custom_call.1} parent=1 // pred_check
      %p76 = pneg %p52
    $region23: #{tpu_custom_call.1} parent=1 // pred_check_branch
      %78 = sbr.rel (%p76) target = $region25
    $region24: #{tpu_custom_call.1} parent=1 // pred_region
      %v79 = vld [vmem:[#allocation2] sm:$0x1]
      %80 = vst [vmem:[#allocation8] sm:$0x1] %v79
    $region25: #{tpu_custom_call.1} parent=1 // pred_fallthru
      _
    // Predicated region
    $region26: #{tpu_custom_call.1} parent=1 // pred_check
      _
    $region27: #{tpu_custom_call.1} parent=1 // pred_check_branch
      %82 = sbr.rel (0) target = $region29
    $region28: #{tpu_custom_call.1} parent=1 // pred_region
      %s84 = ssub.s32 16, 16
      %85 = vsyncadd [#allocation5], %s84
      %s87 = sshll.u32 [#allocation8], 4
      %s88 = int_to_ptr.vmem [resolvable:$true] %s87
      %90 = dma.vmem_to_hbm [thread:$0]  %s88, 16, %s2, [#allocation5]
    $region29: #{tpu_custom_call.1} parent=1 // pred_fallthru
      _
    // Predicated region
    $region30: #{tpu_custom_call.1} parent=1 // pred_check
      _
    $region31: #{tpu_custom_call.1} parent=1 // pred_check_branch
      %92 = sbr.rel (0) target = $region33
    $region32: #{tpu_custom_call.1} parent=1 // pred_region
      %93 = dma.done [#allocation5], 16
    $region33: #{tpu_custom_call.1} parent=1 // pred_fallthru
      _
    %94 = vsyncpa [#allocation4], 1
    %95 = vsyncpa [#allocation7], 1
    %96 = vsyncpa [#allocation5], 1

</llo_original>
